<compile_context>
chip_gen: v6e
topology: v6e:2x2x1
jax: 0.10.0
libtpu: 0.0.40
codegen_flags: <defaults>
</compile_context>

<pallas_src>
from typing import NamedTuple

import jax
import jax.numpy as jnp
import numpy as np
from jax.experimental import pallas as pl
from jax.experimental.pallas import tpu as pltpu


# ---------------------------------------------------------------------------
# One-time runtime probe (hoisted to init): pin down pltpu.roll's shift
# convention so the in-kernel spatial shifts are correct on any platform.
# ---------------------------------------------------------------------------

def _roll_is_jnp_like():
    def k(x_ref, o_ref):
        o_ref[...] = pltpu.roll(x_ref[...], 1, axis=1)

    x = jnp.broadcast_to(jnp.arange(128, dtype=jnp.float32), (8, 128))
    y = pl.pallas_call(
        k, out_shape=jax.ShapeDtypeStruct((8, 128), jnp.float32))(x)
    # jnp.roll semantics: out[:, 0] == in[:, -1] == 127
    return bool(np.asarray(y)[0, 0] == 127.0)


# ---------------------------------------------------------------------------
# Tap validity masks, tiled over the batch-folded lane axis (computed once).
# ---------------------------------------------------------------------------

def make_tap_masks(H, W, B):
    yy = np.repeat(np.arange(H), W)          # (HW,)
    xx = np.tile(np.arange(W), H)            # (HW,)
    ms = []
    for oy in (-1, 0, 1):
        for ox in (-1, 0, 1):
            valid = ((yy + oy >= 0) & (yy + oy < H) &
                     (xx + ox >= 0) & (xx + ox < W)).astype(np.float32)
            ms.append(np.tile(valid, B).reshape(1, B * H * W))
    return jnp.asarray(np.stack(ms, axis=0))  # (9, 1, B*HW) f32


# ---------------------------------------------------------------------------
# Static stage configuration
# ---------------------------------------------------------------------------

class StageConfig(NamedTuple):
    in_c: int
    internal_c: int
    out_c: int
    num_units: int
    num_residuals: int
    use_identity: bool
    H: int
    W: int
    roll_like_jnp: bool


# ---------------------------------------------------------------------------
# Fused whole-stage kernel builder
# ---------------------------------------------------------------------------

def build_osa_stage_forward(cfg: StageConfig):
    H, W = cfg.H, cfg.W
    HW = H * W
    R = cfg.num_residuals
    cin_max = max(cfg.in_c, cfg.internal_c, cfg.out_c)

    def unit_in_channels(u):
        return cfg.in_c if u == 0 else cfg.out_c

    def kernel(x_ref, m_ref, w3_ref, b3_ref, w1_ref, b1_ref, o_ref, col_ref):
        BHW = x_ref.shape[1]

        def conv3x3(h, u, r, cprev):
            # In-kernel im2col: stage 9 rolled+masked taps into VMEM scratch,
            # one tap at a time (no 9-way live vreg concat), then a single
            # merged-K matmul (K = 9*cprev) with bf16 MXU operands.
            t = 0
            for oy in (-1, 0, 1):
                for ox in (-1, 0, 1):
                    d = oy * W + ox
                    if d == 0:
                        tap = h
                    else:
                        s = (-d) % BHW if cfg.roll_like_jnp else d % BHW
                        tap = pltpu.roll(h, s, axis=1) * m_ref[t]
                    col_ref[t * cprev:(t + 1) * cprev, :] = tap
                    t += 1
            K = 9 * cprev
            w = w3_ref[u, r][:, :K]                                  # bf16
            pre = jnp.dot(w, col_ref[:K, :].astype(jnp.bfloat16),
                          preferred_element_type=jnp.float32)
            return jnp.maximum(pre + b3_ref[u, r], 0.0)              # f32

        h_unit = x_ref[...]                                          # (in_c, BHW) f32
        for u in range(cfg.num_units):
            cin = unit_in_channels(u)
            x_val = h_unit
            # Partial-sum 1x1 concat-conv: feat 0 (= unit input) contribution.
            acc = jnp.dot(w1_ref[u, 0][:, :cin],
                          x_val.astype(jnp.bfloat16),
                          preferred_element_type=jnp.float32)        # (out_c, BHW)
            h = x_val
            cprev = cin
            for r in range(R):
                h = conv3x3(h, u, r, cprev)
                acc = acc + jnp.dot(w1_ref[u, r + 1][:, :cfg.internal_c],
                                    h.astype(jnp.bfloat16),
                                    preferred_element_type=jnp.float32)
                cprev = cfg.internal_c
            out = jnp.maximum(acc + b1_ref[u], 0.0)
            if cfg.use_identity and u > 0:
                out = out + x_val                  # in_c == out_c -> plain add
            h_unit = out
        o_ref[...] = h_unit.astype(o_ref.dtype)

    @jax.jit
    def forward(x_nchw, packed):
        B = x_nchw.shape[0]
        BHW = B * HW
        # NCHW -> lane-dense (C, B*HW); lane axis is (b, hw) -> 4x128 lanes here.
        x = jnp.transpose(x_nchw.reshape(B, cfg.in_c, HW),
                          (1, 0, 2)).reshape(cfg.in_c, BHW)

        flops = 0
        for u in range(cfg.num_units):
            cin = unit_in_channels(u)
            cprev = cin
            for _ in range(R):
                flops += 2 * cfg.internal_c * 9 * cprev * BHW
                cprev = cfg.internal_c
            flops += 2 * cfg.out_c * (cin + R * cfg.internal_c) * BHW
        bytes_accessed = (4 * (x.size + cfg.out_c * BHW + packed["masks"].size
                               + packed["b3"].size + packed["b1"].size)
                          + 2 * (packed["w3"].size + packed["w1"].size))

        vmem = pl.BlockSpec(memory_space=pltpu.MemorySpace.VMEM)
        out = pl.pallas_call(
            kernel,
            out_shape=jax.ShapeDtypeStruct((cfg.out_c, BHW), jnp.float32),
            in_specs=[vmem] * 6,
            out_specs=vmem,
            scratch_shapes=[pltpu.VMEM((9 * cin_max, BHW), jnp.float32)],
            cost_estimate=pl.CostEstimate(flops=flops, transcendentals=0,
                                          bytes_accessed=bytes_accessed),
        )(x, packed["masks"], packed["w3"], packed["b3"],
          packed["w1"], packed["b1"])

        return jnp.transpose(out.reshape(cfg.out_c, B, HW),
                             (1, 0, 2)).reshape(B, cfg.out_c, H, W)

    return forward


# ---------------------------------------------------------------------------
# Parameter init (deterministic), BN folding, kernel-layout packing
# ---------------------------------------------------------------------------

def fold_bn(w, gamma, beta, mean, var, eps=1e-5):
    scale = gamma / jnp.sqrt(var + eps)        # (Cout,)
    return w * scale, beta - mean * scale      # w is (..., Cout)


def init_convbn(key, kh, kw, cin, cout):
    k1, k2, k3, k4, k5 = jax.random.split(key, 5)
    w = jax.random.normal(k1, (kh, kw, cin, cout), jnp.float32) * 0.1
    gamma = 1.0 + 0.1 * jax.random.normal(k2, (cout,), jnp.float32)
    beta = 0.1 * jax.random.normal(k3, (cout,), jnp.float32)
    mean = 0.1 * jax.random.normal(k4, (cout,), jnp.float32)
    var = jnp.abs(jax.random.normal(k5, (cout,), jnp.float32)) + 0.5
    return fold_bn(w, gamma, beta, mean, var)


def init_osa_stage(key, in_c, internal_c, out_c, num_units, num_residuals):
    params = []
    cin = in_c
    for u in range(num_units):
        key, *ks = jax.random.split(key, num_residuals + 2)
        res_params = []
        stage_c = cin
        for r in range(num_residuals):
            res_params.append(init_convbn(ks[r], 3, 3, stage_c, internal_c))
            stage_c = internal_c
        concat_params = init_convbn(ks[num_residuals], 1, 1,
                                    cin + internal_c * num_residuals, out_c)
        params.append({"res": res_params, "concat": concat_params,
                       "use_identity": u > 0})   # ix>0 & in_c==out_c -> plain add
        cin = out_c
    return params


def pack_osa_stage(params, *, in_c, internal_c, out_c, H, W, B):
    """HWIO conv params -> padded (unit, conv, Cout, K) arrays, bf16 for MXU."""
    num_units = len(params)
    R = len(params[0]["res"])
    cin_max = max(in_c, internal_c, out_c)
    w3 = np.zeros((num_units, R, internal_c, 9 * cin_max), np.float32)
    b3 = np.zeros((num_units, R, internal_c, 1), np.float32)
    w1 = np.zeros((num_units, R + 1, out_c, cin_max), np.float32)
    b1 = np.zeros((num_units, out_c, 1), np.float32)
    for u, p in enumerate(params):
        for r, (w, b) in enumerate(p["res"]):
            kh, kw, cpr, cout = w.shape
            # row order of the merged K axis matches the kernel's tap order
            wk = np.asarray(jnp.transpose(w, (3, 0, 1, 2))).reshape(
                cout, kh * kw * cpr)
            w3[u, r, :, :kh * kw * cpr] = wk
            b3[u, r, :, 0] = np.asarray(b)
        w1_hwio, bc = p["concat"]
        w1_mat = np.asarray(w1_hwio)[0, 0]                  # (Cin_total, out_c)
        feat_sizes = ([p["res"][0][0].shape[2]] +
                      [wr.shape[3] for (wr, _) in p["res"]])
        off = 0
        for s_i, sz in enumerate(feat_sizes):
            w1[u, s_i, :, :sz] = w1_mat[off:off + sz, :].T
            off += sz
        b1[u, :, 0] = np.asarray(bc)
    return {
        "w3": jnp.asarray(w3, jnp.bfloat16),     # bf16 MXU operands
        "b3": jnp.asarray(b3, jnp.float32),      # f32 elementwise path
        "w1": jnp.asarray(w1, jnp.bfloat16),
        "b1": jnp.asarray(b1, jnp.float32),
        "masks": make_tap_masks(H, W, B),        # f32
    }


# ---------------------------------------------------------------------------
# Plain-JAX (f32) reference of the PyTorch module
# ---------------------------------------------------------------------------

def osa_stage_reference(x_nhwc, params):
    def conv(x, w, pad):
        return jax.lax.conv_general_dilated(
            x, w, window_strides=(1, 1), padding=pad,
            dimension_numbers=("NHWC", "HWIO", "NHWC"))
    x = x_nhwc
    for p in params:
        residual = x
        feats = [x]
        h = x
        for (w, b) in p["res"]:
            h = jnp.maximum(conv(h, w, "SAME") + b, 0.0)
            feats.append(h)
        concat = jnp.concatenate(feats, axis=-1)
        w1, b1 = p["concat"]
        out = jnp.maximum(conv(concat, w1, "VALID") + b1, 0.0)
        if p["use_identity"]:
            out = out + residual
        x = out
    return x


# ---------------------------------------------------------------------------

if __name__ == "__main__":
    roll_like_jnp = _roll_is_jnp_like()          # one-time, outside the jit path

    key = jax.random.PRNGKey(0)
    B, C_in, H, W = 2, 8, 16, 16
    internal_c, out_c = 8, 16
    num_units, num_residuals = 2, 3

    kx, kp = jax.random.split(key)
    x_nchw = jax.random.normal(kx, (B, C_in, H, W), jnp.float32)   # PyTorch layout
    params = init_osa_stage(kp, C_in, internal_c, out_c, num_units, num_residuals)

    cfg = StageConfig(in_c=C_in, internal_c=internal_c, out_c=out_c,
                      num_units=num_units, num_residuals=num_residuals,
                      use_identity=True, H=H, W=W, roll_like_jnp=roll_like_jnp)
    packed = pack_osa_stage(params, in_c=C_in, internal_c=internal_c,
                            out_c=out_c, H=H, W=W, B=B)
    forward = build_osa_stage_forward(cfg)

    out_nchw = forward(x_nchw, packed)
    jax.block_until_ready(out_nchw)

    x_nhwc = jnp.transpose(x_nchw, (0, 2, 3, 1))
    ref_nchw = jnp.transpose(osa_stage_reference(x_nhwc, params), (0, 3, 1, 2))
    # Tolerance loosened for bf16 MXU operands (f32 accumulation).
    np.testing.assert_allclose(np.asarray(out_nchw), np.asarray(ref_nchw),
                               rtol=5e-2, atol=5e-2)
    assert out_nchw.shape == (B, out_c, H, W)
    print("KERNEL_OK")
</pallas_src>

<mosaic_0001>
module attributes {stable_mosaic.version = 11 : i64} {
  func.func @k(%arg0: memref<8x128xf32, #tpu.memory_space<vmem>>, %arg1: memref<8x128xf32, #tpu.memory_space<vmem>>) attributes {dimension_semantics = [], scalar_prefetch = 0 : i64, scratch_operands = 0 : i64, tpu.core_type = #tpu.core_type<tc>} {
    %c0 = arith.constant 0 : index
    %c0_0 = arith.constant 0 : index
    %0 = vector.load %arg0[%c0, %c0_0] : memref<8x128xf32, #tpu.memory_space<vmem>>, vector<8x128xf32>
    %c1_i32 = arith.constant 1 : i32
    %1 = tpu.dynamic_rotate %0 by %c1_i32 dim 1 : vector<8x128xf32>, i32 -> vector<8x128xf32>
    %c0_1 = arith.constant 0 : index
    %c0_2 = arith.constant 0 : index
    %2 = vector.load %arg1[%c0_1, %c0_2] : memref<8x128xf32, #tpu.memory_space<vmem>>, vector<8x128xf32>
    tpu.vector_store %arg1[%c0_1, %c0_2], %1 {strides = array<i32>} : memref<8x128xf32, #tpu.memory_space<vmem>>, vector<8x128xf32>,
    return
  }
}

</mosaic_0001>

<llo_original>
// kernel: tpu_custom_call.1
$region0: #{tpu_custom_call.1}
  #allocation0 [shape = 'u32[]', space=smem, size = 0x4, offset = 0x4, fixed_abs, tag = 'smem constant byte address 0x4 - core index']
  #allocation1 [shape = 'u32[144,128]{1,0:T(1,128)}', space=vmem, size = 0x12000, scoped, tag = 'internal scratch']
  %s0 = inlined_call_operand.hbm [shape: f32[8,128], index: 0, kind: input, shape index: {}]
  %s1 = inlined_call_operand.hbm [shape: f32[8,128], index: 1, kind: output, shape index: {}]
  %s2 = sld [smem:[#allocation0]]
  $region18: #{tpu_custom_call.1} parent=0
    _
  %s4 = ssub.s32 1, %s2
  %s5 = scalar_select 0, %s4, %s2
  $region1: #{tpu_custom_call.1} parent=0
    #allocation2 [shape = 'u8[4096]{0}', space=vmem, size = 0x1000, scoped, tag = 'input window, operand 0, single buffered']
    #allocation3 [shape = 's32[1]{0}', space=sflag, size = 0x4, scoped, tag = 'scoped memory for tpu_custom_call.1']
    #allocation4 [shape = 's32[1]{0}', space=sflag, size = 0x4, scoped, tag = 'scoped memory for tpu_custom_call.1']
    #allocation5 [shape = 'u8[4096]{0}', space=vmem, size = 0x1000, scoped, tag = 'output window, operand 0, single buffered']
    %6 = vsyncpa [#allocation3], 0
    %7 = vsyncpa [#allocation4], 0
    // Predicated region
    $region2: #{tpu_custom_call.1} parent=1 // pred_check
      _
    $region3: #{tpu_custom_call.1} parent=1 // pred_check_branch
      %9 = sbr.rel (0) target = $region5
    $region4: #{tpu_custom_call.1} parent=1 // pred_region
      %s11 = ssub.s32 128, 128
      %12 = vsyncadd [#allocation3], %s11
      %s14 = sshll.u32 [#allocation2], 4
      %s15 = int_to_ptr.vmem [resolvable:$true] %s14
      %17 = dma.hbm_to_vmem [thread:$0]  %s0, 128, %s15, [#allocation3]
    $region5: #{tpu_custom_call.1} parent=1 // pred_fallthru
      _
    // Predicated region
    $region6: #{tpu_custom_call.1} parent=1 // pred_check
      _
    $region7: #{tpu_custom_call.1} parent=1 // pred_check_branch
      %19 = sbr.rel (0) target = $region9
    $region8: #{tpu_custom_call.1} parent=1 // pred_region
      %20 = dma.done [#allocation3], 128
    $region9: #{tpu_custom_call.1} parent=1 // pred_fallthru
      _
    %v21 = vld [vmem:[#allocation2] sm:$0xff]
    %22 = vrot.lane.b32.xlu0 %v21, 1
    %v23 = vpop.permute.xlu0 %22
    %24 = vst [vmem:[#allocation5] sm:$0xff] %v23
    // Predicated region
    $region10: #{tpu_custom_call.1} parent=1 // pred_check
      _
    $region11: #{tpu_custom_call.1} parent=1 // pred_check_branch
      %26 = sbr.rel (0) target = $region13
    $region12: #{tpu_custom_call.1} parent=1 // pred_region
      %s28 = ssub.s32 128, 128
      %29 = vsyncadd [#allocation4], %s28
      %s31 = sshll.u32 [#allocation5], 4
      %s32 = int_to_ptr.vmem [resolvable:$true] %s31
      %34 = dma.vmem_to_hbm [thread:$0]  %s32, 128, %s1, [#allocation4]
    $region13: #{tpu_custom_call.1} parent=1 // pred_fallthru
      _
    // Predicated region
    $region14: #{tpu_custom_call.1} parent=1 // pred_check
      _
    $region15: #{tpu_custom_call.1} parent=1 // pred_check_branch
      %36 = sbr.rel (0) target = $region17
    $region16: #{tpu_custom_call.1} parent=1 // pred_region
      %37 = dma.done [#allocation4], 128
    $region17: #{tpu_custom_call.1} parent=1 // pred_fallthru
      _
    %38 = vsyncpa [#allocation3], 1
    %39 = vsyncpa [#allocation4], 1

</llo_original>
